<compile_context>
chip_gen: v6e
topology: v6e:2x2x1
jax: 0.10.0
libtpu: 0.0.40
codegen_flags: <defaults>
</compile_context>

<pallas_src>
import functools

import jax
import jax.numpy as jnp
from jax.experimental import pallas as pl
from jax.experimental.pallas import tpu as pltpu

KERNEL_SIZES = (3, 5, 7)
NUM_CONVS = len(KERNEL_SIZES)
MAX_PAD = max(KERNEL_SIZES) // 2           # shared zero-pad halo for all convs
NUM_TAPS = 2 * MAX_PAD + 1                 # distinct input-row shifts (= 7)


def _round_up(x, m):
    return -(-x // m) * m


def cnn_kmer_kernel(x_ref, w_ref, b_ref, o_ref, *, Bt, L, T, Tc, E, F):
    """One batch tile (Bt sequences) per grid step.

    x_ref: (Bt, L_in, E)              bf16  zero-padded embedded sequences
    w_ref: (NUM_TAPS*E, NUM_CONVS*F)  bf16  prepacked im2col weights (zero rows
                                            for taps a given conv does not use)
    b_ref: (1, NUM_CONVS*F)           f32   conv biases
    o_ref: (Bt, NUM_CONVS*F)          f32   pooled outputs (lane-dense slab)
    """
    NO = NUM_CONVS * F
    w = w_ref[...]                                     # resident weights (small)

    pooled = None
    # Chunk the sequence axis so the im2col / matmul intermediates stay O(Bt*Tc)
    # regardless of L; the running max stays in vregs (no scratch).
    for c0 in range(0, T, Tc):
        ext = min(Tc, T - c0)                          # multiple of 16
        if c0 >= L:                                    # fully padded chunk
            continue
        # One halo-extended load per chunk; per-tap shifts are value slices
        # (vreg relayout) of narrow bf16 data -- no wide-f32 scratch reloads.
        xc = x_ref[:, c0:c0 + ext + 2 * MAX_PAD, :]    # (Bt, ext+6, E) bf16
        xim = jnp.concatenate(
            [xc[:, d:d + ext, :] for d in range(NUM_TAPS)], axis=-1
        )                                              # (Bt, ext, NUM_TAPS*E)
        # Single MXU matmul for every tap of every conv in this chunk:
        # M = Bt*ext, K = NUM_TAPS*E, N = NUM_CONVS*F, f32 accumulation.
        y = jnp.dot(xim.reshape(Bt * ext, NUM_TAPS * E), w,
                    preferred_element_type=jnp.float32)
        y = y.reshape(Bt, ext, NO)
        if c0 + ext > L:
            # Mask halo / alignment rows out of the global max pool.
            t_idx = jax.lax.broadcasted_iota(jnp.int32, (Bt, ext, NO), 1)
            y = jnp.where(t_idx + c0 < L, y, -jnp.inf)
        m = jnp.max(y, axis=1)                         # (Bt, NO)
        pooled = m if pooled is None else jnp.maximum(pooled, m)

    # ReLU(. + b) is monotone, so it commutes with the max over positions.
    o_ref[...] = jnp.maximum(pooled + b_ref[...], 0.0)


def prepack_conv_params(conv_ws, conv_bs, dtype=jnp.bfloat16):
    """One-time repack of PyTorch Conv1d params into the im2col kernel layout.

    conv_ws[i]: (F, E, k_i) -> W_cat: (NUM_TAPS*E, NUM_CONVS*F).  Row block
    d*E:(d+1)*E holds tap (d - start_i) of conv i (zeros if conv i has no such
    tap), so y = xim @ W_cat yields every conv's output from one matmul.
    conv_bs[i]: (F,) -> (1, NUM_CONVS*F).
    """
    F, E, _ = conv_ws[0].shape
    w_cat = jnp.zeros((NUM_TAPS * E, NUM_CONVS * F), jnp.float32)
    for ci, (w, k) in enumerate(zip(conv_ws, KERNEL_SIZES)):
        start = MAX_PAD - k // 2
        for j in range(k):
            w_cat = w_cat.at[(start + j) * E:(start + j + 1) * E,
                             ci * F:(ci + 1) * F].set(jnp.transpose(w[:, :, j]))
    b_all = jnp.concatenate(conv_bs, axis=0)[None, :].astype(jnp.float32)
    return w_cat.astype(dtype), b_all


def cnn_kmer_branch(sequences, emb_table, w_cat, b_all):
    """sequences: (B, L) int32 -> (B, NUM_CONVS*F) float32."""
    B, L = sequences.shape
    vocab, E = emb_table.shape
    NO = b_all.shape[1]
    F = NO // NUM_CONVS

    # Matmul row extent per sequence (16-aligned -> clean bf16 reshapes) and the
    # padded input extent (left halo MAX_PAD, right halo + alignment).
    T = _round_up(L, 16)
    L_in = T + 16                        # >= T + 2*MAX_PAD, multiple of 16
    Tc = min(T, 512)                     # in-kernel L-chunk (bounds VMEM for long L)

    # ---- batch tile: MXU-M target + VMEM budget + v7x dual-TC awareness ----
    M_TARGET = 1024                      # v6e/v7x MXU M target (review item #4)
    bt_m = max(1, -(-M_TARGET // Tc))
    per_seq_bytes = (2 * L_in * E * 2            # x tile, double-buffered bf16
                     + 2 * Tc * NUM_TAPS * E * 2 # im2col value (+ tap slices)
                     + Tc * NO * 4               # f32 matmul result
                     + 2 * NO * 4)               # output block, double-buffered
    resident_bytes = 2 * NUM_TAPS * E * NO * 2 + 2 * NO * 4
    budget = 24 * 1024 * 1024
    bt_vmem = max(1, (budget - resident_bytes) // per_seq_bytes)
    Bt = max(1, min(bt_m, bt_vmem))
    if B >= 16:
        # v7x has 2 TensorCores: keep >= 2 grid steps so the 'parallel' axis shards.
        Bt = min(Bt, _round_up(-(-B // 2), 8))
    if Bt >= B:
        Bt = B                           # single grid step: block == full extent
    else:
        Bt = max(8, (Bt // 8) * 8)       # multi-step: output sublane rule
    B_pad = _round_up(B, Bt)

    # ---- embedding gather fused with halo padding: ONE take, one HBM pass ----
    pad_id = vocab                       # extra all-zeros row appended below
    emb_ext = jnp.concatenate(
        [emb_table, jnp.zeros((1, E), emb_table.dtype)], axis=0).astype(jnp.bfloat16)
    seq_pad = jnp.pad(sequences,
                      ((0, B_pad - B), (MAX_PAD, L_in - L - MAX_PAD)),
                      constant_values=pad_id)
    x_pad = jnp.take(emb_ext, seq_pad, axis=0)           # (B_pad, L_in, E) bf16

    out = pl.pallas_call(
        functools.partial(cnn_kmer_kernel, Bt=Bt, L=L, T=T, Tc=Tc, E=E, F=F),
        out_shape=jax.ShapeDtypeStruct((B_pad, NO), jnp.float32),
        grid_spec=pltpu.PrefetchScalarGridSpec(
            num_scalar_prefetch=0,
            grid=(B_pad // Bt,),
            in_specs=[
                pl.BlockSpec((Bt, L_in, E), lambda b: (b, 0, 0)),
                pl.BlockSpec((NUM_TAPS * E, NO), lambda b: (0, 0)),  # resident W
                pl.BlockSpec((1, NO), lambda b: (0, 0)),             # resident bias
            ],
            out_specs=pl.BlockSpec((Bt, NO), lambda b: (b, 0)),
        ),
        compiler_params=pltpu.CompilerParams(
            dimension_semantics=("parallel",),
            vmem_limit_bytes=48 * 1024 * 1024),
    )(x_pad, w_cat, b_all)
    return out[:B]


def ref_forward(sequences, emb_table, conv_ws, conv_bs):
    """Pure-JAX reference mirroring the PyTorch forward (bf16-rounded params)."""
    emb = emb_table.astype(jnp.bfloat16).astype(jnp.float32)
    x = jnp.take(emb, sequences, axis=0)           # (B, L, E)
    xc = jnp.transpose(x, (0, 2, 1))               # (B, E, L)
    outs = []
    for w, b in zip(conv_ws, conv_bs):
        k = w.shape[-1]
        wq = w.astype(jnp.bfloat16).astype(jnp.float32)
        y = jax.lax.conv_general_dilated(
            xc, wq, window_strides=(1,), padding=[(k // 2, k // 2)],
            dimension_numbers=("NCH", "OIH", "NCH"),
            precision=jax.lax.Precision.HIGHEST)
        y = jax.nn.relu(y + b[None, :, None])
        outs.append(jnp.max(y, axis=-1))
    return jnp.concatenate(outs, axis=1)


def _make_params(key, vocab_size, embed_dim, num_filters):
    k_emb, *k_conv = jax.random.split(key, 1 + 2 * NUM_CONVS)
    emb_table = jax.random.normal(k_emb, (vocab_size, embed_dim), jnp.float32)
    emb_table = emb_table.at[vocab_size - 1].set(0.0)     # padding_idx row
    conv_ws, conv_bs = [], []
    for i, k in enumerate(KERNEL_SIZES):
        bound = 1.0 / (embed_dim * k) ** 0.5
        conv_ws.append(jax.random.uniform(
            k_conv[2 * i], (num_filters, embed_dim, k), jnp.float32, -bound, bound))
        conv_bs.append(jax.random.uniform(
            k_conv[2 * i + 1], (num_filters,), jnp.float32, -bound, bound))
    return emb_table, conv_ws, conv_bs


if __name__ == "__main__":
    key = jax.random.PRNGKey(0)

    # (B, L, vocab, E, F):
    #   1) small single-step config
    #   2) multi-grid-step config (batch padding, Bt multiple of 8, odd L)
    #   3) long-sequence config (exercises in-kernel L-chunking, 2 chunks)
    configs = [(2, 8, 12, 32, 16), (20, 11, 12, 32, 16), (2, 600, 12, 32, 16)]
    for cfg_key, (B, L, vocab_size, embed_dim, num_filters) in zip(
            jax.random.split(key, len(configs)), configs):
        k_par, k_seq = jax.random.split(cfg_key)
        emb_table, conv_ws, conv_bs = _make_params(
            k_par, vocab_size, embed_dim, num_filters)
        sequences = jax.random.randint(k_seq, (B, L), 0, vocab_size, jnp.int32)

        w_cat, b_all = prepack_conv_params(conv_ws, conv_bs)   # one-time prepack
        out = cnn_kmer_branch(sequences, emb_table, w_cat, b_all)
        out = jax.block_until_ready(out)

        ref = ref_forward(sequences, emb_table, conv_ws, conv_bs)
        assert out.shape == (B, NUM_CONVS * num_filters), out.shape
        err = float(jnp.abs(out - ref).max())
        assert jnp.allclose(out, ref, atol=1e-4, rtol=1e-4), err

    print("KERNEL_OK")
</pallas_src>

<mosaic_0001>
module attributes {stable_mosaic.version = 11 : i64} {
  func.func @cnn_kmer_kernel(%arg0: i32, %arg1: memref<2x32x32xbf16, #tpu.memory_space<vmem>>, %arg2: memref<224x48xbf16, #tpu.memory_space<vmem>>, %arg3: memref<1x48xf32, #tpu.memory_space<vmem>>, %arg4: memref<2x48xf32, #tpu.memory_space<vmem>>) attributes {dimension_semantics = [#tpu.dimension_semantics<parallel>], iteration_bounds = array<i64: 1>, scalar_prefetch = 0 : i64, scratch_operands = 0 : i64, tpu.core_type = #tpu.core_type<tc>, window_params = [{transform_indices = @transform_0, window_bounds = array<i64: 2, 32, 32>}, {pipeline_mode = #tpu.pipeline_mode<synchronous>, transform_indices = @transform_1, window_bounds = array<i64: 224, 48>}, {pipeline_mode = #tpu.pipeline_mode<synchronous>, transform_indices = @transform_2, window_bounds = array<i64: 1, 48>}, {transform_indices = @transform_3, window_bounds = array<i64: 2, 48>}]} {
    %c0 = arith.constant 0 : index
    %c0_0 = arith.constant 0 : index
    %0 = vector.load %arg2[%c0, %c0_0] : memref<224x48xbf16, #tpu.memory_space<vmem>>, vector<224x48xbf16>
    %c0_1 = arith.constant 0 : index
    %c0_2 = arith.constant 0 : index
    %c0_3 = arith.constant 0 : index
    %1 = vector.load %arg1[%c0_1, %c0_2, %c0_3] : memref<2x32x32xbf16, #tpu.memory_space<vmem>>, vector<2x22x32xbf16>
    %2 = vector.extract_strided_slice %1 {offsets = [0, 0, 0], sizes = [2, 16, 32], strides = [1, 1, 1]} : vector<2x22x32xbf16> to vector<2x16x32xbf16>
    %3 = vector.extract_strided_slice %1 {offsets = [0, 1, 0], sizes = [2, 16, 32], strides = [1, 1, 1]} : vector<2x22x32xbf16> to vector<2x16x32xbf16>
    %4 = vector.extract_strided_slice %1 {offsets = [0, 2, 0], sizes = [2, 16, 32], strides = [1, 1, 1]} : vector<2x22x32xbf16> to vector<2x16x32xbf16>
    %5 = vector.extract_strided_slice %1 {offsets = [0, 3, 0], sizes = [2, 16, 32], strides = [1, 1, 1]} : vector<2x22x32xbf16> to vector<2x16x32xbf16>
    %6 = vector.extract_strided_slice %1 {offsets = [0, 4, 0], sizes = [2, 16, 32], strides = [1, 1, 1]} : vector<2x22x32xbf16> to vector<2x16x32xbf16>
    %7 = vector.extract_strided_slice %1 {offsets = [0, 5, 0], sizes = [2, 16, 32], strides = [1, 1, 1]} : vector<2x22x32xbf16> to vector<2x16x32xbf16>
    %8 = vector.extract_strided_slice %1 {offsets = [0, 6, 0], sizes = [2, 16, 32], strides = [1, 1, 1]} : vector<2x22x32xbf16> to vector<2x16x32xbf16>
    %9 = tpu.concatenate %2, %3, %4, %5, %6, %7, %8 in 2 : vector<2x16x32xbf16>, vector<2x16x32xbf16>, vector<2x16x32xbf16>, vector<2x16x32xbf16>, vector<2x16x32xbf16>, vector<2x16x32xbf16>, vector<2x16x32xbf16> -> vector<2x16x224xbf16>
    %10 = vector.shape_cast %9 : vector<2x16x224xbf16> to vector<32x224xbf16>
    %cst = arith.constant dense<0.000000e+00> : vector<32x48xf32>
    %11 = tpu.matmul %10, %0, %cst {dimension_numbers = #tpu.dot_dimension_numbers<[1], [0], [0], [1], [0, 0, 1, 1], [], []>} : vector<32x224xbf16>, vector<224x48xbf16>, vector<32x48xf32> -> vector<32x48xf32>
    %12 = vector.shape_cast %11 : vector<32x48xf32> to vector<2x16x48xf32>
    %13 = tpu.iota {dimensions = array<i32: 1>} : vector<2x16x48xi32>
    %c0_i32 = arith.constant 0 : i32
    %14 = vector.broadcast %c0_i32 : i32 to vector<2x16x48xi32>
    %15 = arith.addi %13, %14 : vector<2x16x48xi32>
    %c8_i32 = arith.constant 8 : i32
    %16 = vector.broadcast %c8_i32 : i32 to vector<2x16x48xi32>
    %17 = arith.cmpi slt, %15, %16 : vector<2x16x48xi32>
    %cst_4 = arith.constant 0xFF800000 : f32
    %18 = vector.broadcast %cst_4 : f32 to vector<2x16x48xf32>
    %19 = arith.select %17, %12, %18 : vector<2x16x48xi1>, vector<2x16x48xf32>
    %cst_5 = arith.constant dense<0xFF800000> : vector<2x48xf32>
    %20 = vector.multi_reduction <maximumf>, %19, %cst_5 [1] : vector<2x16x48xf32> to vector<2x48xf32>
    %c0_6 = arith.constant 0 : index
    %c0_7 = arith.constant 0 : index
    %21 = vector.load %arg3[%c0_6, %c0_7] : memref<1x48xf32, #tpu.memory_space<vmem>>, vector<1x48xf32>
    %22 = vector.broadcast %21 : vector<1x48xf32> to vector<2x48xf32>
    %23 = arith.addf %20, %22 : vector<2x48xf32>
    %cst_8 = arith.constant 0.000000e+00 : f32
    %24 = vector.broadcast %cst_8 : f32 to vector<2x48xf32>
    %25 = arith.maximumf %23, %24 : vector<2x48xf32>
    %c0_9 = arith.constant 0 : index
    %c0_10 = arith.constant 0 : index
    %26 = vector.load %arg4[%c0_9, %c0_10] : memref<2x48xf32, #tpu.memory_space<vmem>>, vector<2x48xf32>
    tpu.vector_store %arg4[%c0_9, %c0_10], %25 {strides = array<i32>} : memref<2x48xf32, #tpu.memory_space<vmem>>, vector<2x48xf32>,
    return
  }
  func.func @transform_0(%arg0: i32) -> (i32, i32, i32) {
    %c0_i32 = arith.constant 0 : i32
    %c0_i32_0 = arith.constant 0 : i32
    %c0_i32_1 = arith.constant 0 : i32
    return %arg0, %c0_i32, %c0_i32_0 : i32, i32, i32
  }
  func.func @transform_1(%arg0: i32) -> (i32, i32) {
    %c0_i32 = arith.constant 0 : i32
    %c0_i32_0 = arith.constant 0 : i32
    %c0_i32_1 = arith.constant 0 : i32
    return %c0_i32, %c0_i32_0 : i32, i32
  }
  func.func @transform_2(%arg0: i32) -> (i32, i32) {
    %c0_i32 = arith.constant 0 : i32
    %c0_i32_0 = arith.constant 0 : i32
    %c0_i32_1 = arith.constant 0 : i32
    return %c0_i32, %c0_i32_0 : i32, i32
  }
  func.func @transform_3(%arg0: i32) -> (i32, i32) {
    %c0_i32 = arith.constant 0 : i32
    %c0_i32_0 = arith.constant 0 : i32
    return %arg0, %c0_i32 : i32, i32
  }
}

</mosaic_0001>

<llo_original>
// kernel: tpu_custom_call.1
$region0: #{tpu_custom_call.1}
  #allocation0 [shape = 'u32[]', space=smem, size = 0x4, offset = 0x4, fixed_abs, tag = 'smem constant byte address 0x4 - core index']
  #allocation1 [shape = 'u32[144,128]{1,0:T(1,128)}', space=vmem, size = 0x12000, scoped, tag = 'internal scratch']
  %s0 = inlined_call_operand.vmem [shape: bf16[2,32,32], index: 0, kind: input, shape index: {}]
  %s1 = inlined_call_operand.vmem [shape: bf16[224,48], index: 1, kind: input, shape index: {}]
  %s2 = inlined_call_operand.vmem [shape: f32[1,48], index: 2, kind: input, shape index: {}]
  %s3 = inlined_call_operand.hbm [shape: f32[2,48], index: 3, kind: output, shape index: {}]
  %s4 = sld [smem:[#allocation0]]
  $region22: #{tpu_custom_call.1} parent=0
    _
  %s6 = ssub.s32 1, %s4
  %s7 = scalar_select 0, %s6, %s4
  $region1: #{tpu_custom_call.1} parent=0
    #allocation2 [shape = 'u8[1024]{0}', space=vmem, size = 0x400, scoped, tag = 'output window, operand 0, single buffered']
    #allocation3 [shape = 's32[1]{0}', space=sflag, size = 0x4, scoped, tag = 'scoped memory for tpu_custom_call.1']
    %8 = vsyncpa [#allocation3], 0
    // Predicated region
    $region2: #{tpu_custom_call.1} parent=1 // pred_check
      _
    $region3: #{tpu_custom_call.1} parent=1 // pred_check_branch
      %10 = sbr.rel (0) target = $region5
    $region4: #{tpu_custom_call.1} parent=1 // pred_region
      _
    $region5: #{tpu_custom_call.1} parent=1 // pred_fallthru
      _
    // Predicated region
    $region6: #{tpu_custom_call.1} parent=1 // pred_check
      _
    $region7: #{tpu_custom_call.1} parent=1 // pred_check_branch
      %12 = sbr.rel (0) target = $region9
    $region8: #{tpu_custom_call.1} parent=1 // pred_region
      _
    $region9: #{tpu_custom_call.1} parent=1 // pred_fallthru
      _
    // Predicated region
    $region10: #{tpu_custom_call.1} parent=1 // pred_check
      _
    $region11: #{tpu_custom_call.1} parent=1 // pred_check_branch
      %14 = sbr.rel (0) target = $region13
    $region12: #{tpu_custom_call.1} parent=1 // pred_region
      _
    $region13: #{tpu_custom_call.1} parent=1 // pred_fallthru
      _
    %v16 = vld [vmem:[%s1] sm:$0xf]
    %v17 = vld [vmem:[%s1 + $0x4] sm:$0xf]
    %v18 = vld [vmem:[%s1 + $0x8] sm:$0xf]
    %v19 = vld [vmem:[%s1 + $0xc] sm:$0xf]
    %v20 = vld [vmem:[%s1 + $0x10] sm:$0xf]
    %v21 = vld [vmem:[%s1 + $0x14] sm:$0xf]
    %v22 = vld [vmem:[%s1 + $0x18] sm:$0xf]
    %v23 = vld [vmem:[%s1 + $0x1c] sm:$0xf]
    %v24 = vld [vmem:[%s1 + $0x20] sm:$0xf]
    %v25 = vld [vmem:[%s1 + $0x24] sm:$0xf]
    %v26 = vld [vmem:[%s1 + $0x28] sm:$0xf]
    %v27 = vld [vmem:[%s1 + $0x2c] sm:$0xf]
    %v28 = vld [vmem:[%s1 + $0x30] sm:$0xf]
    %v29 = vld [vmem:[%s1 + $0x34] sm:$0xf]
    %v30 = vld [vmem:[%s1 + $0x38] sm:$0xf]
    %v31 = vld [vmem:[%s1 + $0x3c] sm:$0xf]
    %v32 = vld [vmem:[%s1 + $0x40] sm:$0xf]
    %v33 = vld [vmem:[%s1 + $0x44] sm:$0xf]
    %v34 = vld [vmem:[%s1 + $0x48] sm:$0xf]
    %v35 = vld [vmem:[%s1 + $0x4c] sm:$0xf]
    %v36 = vld [vmem:[%s1 + $0x50] sm:$0xf]
    %v37 = vld [vmem:[%s1 + $0x54] sm:$0xf]
    %v38 = vld [vmem:[%s1 + $0x58] sm:$0xf]
    %v39 = vld [vmem:[%s1 + $0x5c] sm:$0xf]
    %v40 = vld [vmem:[%s1 + $0x60] sm:$0xf]
    %v41 = vld [vmem:[%s1 + $0x64] sm:$0xf]
    %v42 = vld [vmem:[%s1 + $0x68] sm:$0xf]
    %v43 = vld [vmem:[%s1 + $0x6c] sm:$0xf]
    %v44 = vld [vmem:[%s0] sm:$0xf]
    %v45 = vld [vmem:[%s0 + $0x4] sm:$0xf]
    %v46 = vld [vmem:[%s0 + $0x8] sm:$0x7]
    %v47 = vld [vmem:[%s0 + $0x10] sm:$0xf]
    %v48 = vld [vmem:[%s0 + $0x14] sm:$0xf]
    %v49 = vld [vmem:[%s0 + $0x18] sm:$0x7]
    %v54 = vunpack.c.l.b16 %v44
    %v55 = vunpack.c.l.b16 %v45
    %v56 = vunpack.c.l.b16 %v47
    %v57 = vunpack.c.l.b16 %v48
    %v58 = vpack.c.b16 %v55, %v54
    %v59 = vpack.c.b16 %v57, %v56
    %v62 = vunpack.c.l.b16 %v46
    %v63 = vunpack.c.l.b16 %v49
    %v64 = vpack.c.b16 %v62, %v62
    %v65 = vpack.c.b16 %v63, %v63
    %vm66 = vsmask.f32 7424
    %v68 = vshrl.u32 %v58, 16
    %v70 = vshll.u32 %v58, 16
    %v72 = vrot.slane %v70, 1
    %v73 = vor.u32 %v68, %v72
    %v75 = vshll.u32 %v64, 16
    %v77 = vrot.slane %v75, 1
    %v78 = vsel %vm66, %v73, %v77
    %v80 = vshrl.u32 %v59, 16
    %v82 = vshll.u32 %v59, 16
    %v84 = vrot.slane %v82, 1
    %v85 = vor.u32 %v80, %v84
    %v87 = vshll.u32 %v65, 16
    %v89 = vrot.slane %v87, 1
    %v90 = vsel %vm66, %v85, %v89
    %91 = vrot.lane.b32.xlu0 %v78, 32
    %v92 = vpop.permute.xlu0 %91
    %93 = vrot.lane.b32.xlu0 %v90, 32
    %v94 = vpop.permute.xlu0 %93
    %vm95 = vcmask 1046528
    %v96 = vrot.slane %v58, 1
    %v97 = vrot.slane %v64, 1
    %v98 = vsel %vm95, %v96, %v97
    %v99 = vrot.slane %v59, 1
    %v100 = vrot.slane %v65, 1
    %v101 = vsel %vm95, %v99, %v100
    %102 = vrot.lane.b32.xlu0 %v98, 64
    %v103 = vpop.permute.xlu0 %102
    %104 = vrot.lane.b32.xlu0 %v101, 64
    %v105 = vpop.permute.xlu0 %104
    %vm106 = vsmask.f32 6400
    %v107 = vrot.slane %v68, 1
    %v108 = vrot.slane %v70, 2
    %v109 = vor.u32 %v107, %v108
    %v110 = vshrl.u32 %v64, 16
    %v112 = vrot.slane %v110, 1
    %v113 = vrot.slane %v75, 2
    %v114 = vor.u32 %v112, %v113
    %v115 = vsel %vm106, %v109, %v114
    %v116 = vrot.slane %v80, 1
    %v117 = vrot.slane %v82, 2
    %v118 = vor.u32 %v116, %v117
    %v119 = vshrl.u32 %v65, 16
    %v121 = vrot.slane %v119, 1
    %v122 = vrot.slane %v87, 2
    %v123 = vor.u32 %v121, %v122
    %v124 = vsel %vm106, %v118, %v123
    %125 = vrot.lane.b32.xlu0 %v115, 96
    %v126 = vpop.permute.xlu0 %125
    %127 = vrot.lane.b32.xlu0 %v124, 96
    %v128 = vpop.permute.xlu0 %127
    %vm129 = vcmask 1045504
    %v130 = vrot.slane %v58, 2
    %v131 = vrot.slane %v64, 2
    %v132 = vsel %vm129, %v130, %v131
    %v133 = vrot.slane %v59, 2
    %v134 = vrot.slane %v65, 2
    %v135 = vsel %vm129, %v133, %v134
    %vm136 = vsmask.f32 5376
    %v137 = vrot.slane %v68, 2
    %v138 = vrot.slane %v70, 3
    %v139 = vor.u32 %v137, %v138
    %v140 = vrot.slane %v110, 2
    %v141 = vrot.slane %v75, 3
    %v142 = vor.u32 %v140, %v141
    %v143 = vsel %vm136, %v139, %v142
    %v144 = vrot.slane %v80, 2
    %v145 = vrot.slane %v82, 3
    %v146 = vor.u32 %v144, %v145
    %v147 = vrot.slane %v119, 2
    %v148 = vrot.slane %v87, 3
    %v149 = vor.u32 %v147, %v148
    %v150 = vsel %vm136, %v146, %v149
    %151 = vrot.lane.b32.xlu0 %v143, 32
    %v152 = vpop.permute.xlu0 %151
    %153 = vrot.lane.b32.xlu0 %v150, 32
    %v154 = vpop.permute.xlu0 %153
    %vm155 = vcmask 1044480
    %v156 = vrot.slane %v58, 3
    %v157 = vrot.slane %v64, 3
    %v158 = vsel %vm155, %v156, %v157
    %v159 = vrot.slane %v59, 3
    %v160 = vrot.slane %v65, 3
    %v161 = vsel %vm155, %v159, %v160
    %162 = vrot.lane.b32.xlu0 %v158, 64
    %v163 = vpop.permute.xlu0 %162
    %164 = vrot.lane.b32.xlu0 %v161, 64
    %v165 = vpop.permute.xlu0 %164
    %vm166 = vcmask 261120
    %v168 = vsel %vm166, %v58, %v92
    %v170 = vsel %vm166, %v59, %v94
    %vm171 = vcmask 523264
    %v173 = vsel %vm171, %v168, %v103
    %v175 = vsel %vm171, %v170, %v105
    %vm176 = vcmask 785408
    %v178 = vsel %vm176, %v173, %v126
    %v181 = vsel %vm176, %v175, %v128
    %v185 = vsel %vm166, %v132, %v152
    %v188 = vsel %vm166, %v135, %v154
    %v190 = vsel %vm171, %v185, %v163
    %v192 = vsel %vm171, %v188, %v165
    %v221 = vunpack.c.l.b16 %v16
    %v222 = vunpack.c.l.b16 %v17
    %v223 = vunpack.c.l.b16 %v18
    %v224 = vunpack.c.l.b16 %v19
    %v225 = vunpack.c.l.b16 %v20
    %v226 = vunpack.c.l.b16 %v21
    %v227 = vunpack.c.l.b16 %v22
    %v228 = vunpack.c.l.b16 %v23
    %v229 = vunpack.c.l.b16 %v24
    %v230 = vunpack.c.l.b16 %v25
    %v231 = vunpack.c.l.b16 %v26
    %v232 = vunpack.c.l.b16 %v27
    %v233 = vunpack.c.l.b16 %v28
    %v234 = vunpack.c.l.b16 %v29
    %v235 = vunpack.c.l.b16 %v30
    %v236 = vunpack.c.l.b16 %v31
    %v237 = vunpack.c.l.b16 %v32
    %v238 = vunpack.c.l.b16 %v33
    %v239 = vunpack.c.l.b16 %v34
    %v240 = vunpack.c.l.b16 %v35
    %v241 = vunpack.c.l.b16 %v36
    %v242 = vunpack.c.l.b16 %v37
    %v243 = vunpack.c.l.b16 %v38
    %v244 = vunpack.c.l.b16 %v39
    %v245 = vunpack.c.l.b16 %v40
    %v246 = vunpack.c.l.b16 %v41
    %v247 = vunpack.c.l.b16 %v42
    %v248 = vunpack.c.l.b16 %v43
    %v249 = vpack.c.b16 %v222, %v221
    %v250 = vpack.c.b16 %v224, %v223
    %v251 = vpack.c.b16 %v226, %v225
    %v252 = vpack.c.b16 %v228, %v227
    %v253 = vpack.c.b16 %v230, %v229
    %v254 = vpack.c.b16 %v232, %v231
    %v255 = vpack.c.b16 %v234, %v233
    %v256 = vpack.c.b16 %v236, %v235
    %v257 = vpack.c.b16 %v238, %v237
    %v258 = vpack.c.b16 %v240, %v239
    %v259 = vpack.c.b16 %v242, %v241
    %v260 = vpack.c.b16 %v244, %v243
    %v261 = vpack.c.b16 %v246, %v245
    %v262 = vpack.c.b16 %v248, %v247
    %v277 = vsel %vm176, %v190, 0
    %v279 = vsel %vm176, %v192, 0
    %281 = vmatprep.subr.bf16.mxu0 0
    %282 = vmatpush1.bf16.msra.mxu0 %v256
    %283 = vmatprep.subr.bf16.mxu0 0
    %284 = vmatpush1.bf16.msra.mxu0 %v255
    %285 = vmatprep.subr.bf16.mxu0 0
    %286 = vmatpush1.bf16.msra.mxu0 %v254
    %287 = vmatprep.subr.bf16.mxu0 0
    %288 = vmatpush1.bf16.msra.mxu0 %v253
    %289 = vmatprep.subr.bf16.mxu0 0
    %290 = vmatpush1.bf16.msra.mxu0 %v252
    %291 = vmatprep.subr.bf16.mxu0 0
    %292 = vmatpush1.bf16.msra.mxu0 %v251
    %293 = vmatprep.subr.bf16.mxu0 0
    %294 = vmatpush1.bf16.msra.mxu0 %v250
    %295 = vmatprep.subr.bf16.mxu0 0
    %296 = vmatpush1.bf16.msra.mxu0 %v249
    %297 = vmatprep.subr.bf16.mxu0 0
    %298 = vmatpush2.bf16.msra.mxu0 0
    %299 = vmatprep.subr.bf16.mxu0 0
    %300 = vmatpush2.bf16.msra.mxu0 0
    %301 = vmatprep.subr.bf16.mxu0 0
    %302 = vmatpush2.bf16.msra.mxu0 %v262
    %303 = vmatprep.subr.bf16.mxu0 0
    %304 = vmatpush2.bf16.msra.mxu0 %v261
    %305 = vmatprep.subr.bf16.mxu0 0
    %306 = vmatpush2.bf16.msra.mxu0 %v260
    %307 = vmatprep.subr.bf16.mxu0 0
    %308 = vmatpush2.bf16.msra.mxu0 %v259
    %309 = vmatprep.subr.bf16.mxu0 0
    %310 = vmatpush2.bf16.msra.mxu0 %v258
    %311 = vmatprep.subr.bf16.mxu0 0
    %312 = vmatpush2.bf16.msra.mxu0 %v257
    %313 = vmatprep.mubr.bf16.mxu0 %v277
    %314 = vmatmul.mubr.bf16.gmra.mxu0 %v178
    %v315 = vpop.f32.mrf.mxu0
    %v316 = vadd.f32 0.0, %v315
    %v317 = vpop.f32.mrf.mxu0
    %v318 = vpop.f32.mrf.mxu0
    %v319 = vadd.f32 0.0, %v318
    %v320 = vpop.f32.mrf.mxu0
    %321 = vmatprep.mubr.bf16.mxu0 %v279
    %322 = vmatmul.mubr.bf16.gmra.mxu0 %v181
    %v323 = vpop.f32.mrf.mxu0
    %v324 = vadd.f32 0.0, %v323
    %v325 = vpop.f32.mrf.mxu0
    %v326 = vpop.f32.mrf.mxu0
    %v327 = vadd.f32 0.0, %v326
    %v328 = vpop.f32.mrf.mxu0
    %329 = vdwg.mxu0
    %v330 = vlaneseq
    %v331 = vshrl.u32 %v330, 7
    %v332 = vadd.s32 %v331, 8
    %vm333 = vcmp.lt.s32.totalorder %v331, 8
    %vm334 = vcmp.lt.s32.totalorder %v332, 8
    %v335 = vsel %vm333, %v316, -inf
    %v336 = vsel %vm334, %v319, -inf
    %v337 = vsel %vm333, %v324, -inf
    %v338 = vsel %vm334, %v327, -inf
    %vm339 = vcmask 392192
    %v340 = vsel %vm339, %v335, -inf
    %v341 = vsel %vm339, %v336, -inf
    %v342 = vmax.f32 %v340, %v341
    %v343 = vrot.slane %v342, 4
    %v344 = vmax.f32 %v342, %v343
    %v345 = vrot.slane %v344, 2
    %v346 = vmax.f32 %v344, %v345
    %v347 = vrot.slane %v346, 1
    %v348 = vmax.f32 %v346, %v347
    %v349 = vsel %vm339, %v337, -inf
    %v350 = vsel %vm339, %v338, -inf
    %v351 = vmax.f32 %v349, %v350
    %v352 = vrot.slane %v351, 4
    %v353 = vmax.f32 %v351, %v352
    %v354 = vrot.slane %v353, 2
    %v355 = vmax.f32 %v353, %v354
    %v356 = vrot.slane %v355, 1
    %v357 = vmax.f32 %v355, %v356
    %v358 = vld [vmem:[%s2] sm:$0x1]
    %v360 = vlaneseq
    %v361 = vshrl.u32 %v360, 7
    %v362 = vsub.s32 0, %v361
    %v363 = vrot.slane %v358, %v362
    %v365 = vadd.f32 %v348, %v363
    %v366 = vadd.f32 %v357, %v363
    %v367 = vmax.f32 %v365, 0.0
    %v368 = vmax.f32 %v366, 0.0
    %v371 = vrot.slane %v368, 7
    %vm372 = vcmask 1041409
    %v373 = vsel %vm372, %v371, %v367
    %vm375 = vcmask 386048
    %376 = vst.msk [vmem:[#allocation2] sm:$0x3] %vm375, %v373
    // Predicated region
    $region14: #{tpu_custom_call.1} parent=1 // pred_check
      _
    $region15: #{tpu_custom_call.1} parent=1 // pred_check_branch
      %378 = sbr.rel (0) target = $region17
    $region16: #{tpu_custom_call.1} parent=1 // pred_region
      %s380 = ssub.s32 32, 32
      %381 = vsyncadd [#allocation3], %s380
      %s383 = sshll.u32 [#allocation2], 4
      %s384 = int_to_ptr.vmem [resolvable:$true] %s383
      %386 = dma.vmem_to_hbm [thread:$0]  %s384, 32, %s3, [#allocation3]
    $region17: #{tpu_custom_call.1} parent=1 // pred_fallthru
      _
    // Predicated region
    $region18: #{tpu_custom_call.1} parent=1 // pred_check
      _
    $region19: #{tpu_custom_call.1} parent=1 // pred_check_branch
      %388 = sbr.rel (0) target = $region21
    $region20: #{tpu_custom_call.1} parent=1 // pred_region
      %389 = dma.done [#allocation3], 32
    $region21: #{tpu_custom_call.1} parent=1 // pred_fallthru
      _
    %390 = vsyncpa [#allocation3], 1

</llo_original>
